<compile_context>
chip_gen: v5e
topology: v5e:2x2
jax: 0.10.0
libtpu: 0.0.40
codegen_flags: <defaults>
</compile_context>

<pallas_src>
import math

import jax
import jax.numpy as jnp
import numpy as np
from jax.experimental import pallas as pl
from jax.experimental.pallas import tpu as pltpu

LN2 = math.log(2.0)


def _shifted_softplus(x):
    # softplus(x) - ln(2), numerically stable (EUP exp/log1p + VPU elementwise), f32.
    return jnp.maximum(x, 0.0) + jnp.log1p(jnp.exp(-jnp.abs(x))) - LN2


def _elemental_atomwise_kernel(x_ref, z_ref, idxm_ref,
                               w1_ref, b1_ref, erep_ref, gadd_ref, w2_ref,
                               y_ref, acc_ref):
    # x_ref    : (tile_n, n_in)     mxu dtype (bf16 or f32)
    # z_ref    : (tile_n, 1)        int32 atomic numbers
    # idxm_ref : (1, tile_n)        int32 molecule index per atom (lane-dense)
    # w1_ref   : (n_in, EH_tot)     mxu dtype; hidden cols = per-element W1 concat,
    #                               gate cols + pad cols = 0
    # b1_ref   : (1, EH_tot)        f32 (gate/pad cols = 0)
    # erep_ref : (1, EH_tot)        int32 (element id per column, -1 for pad cols)
    # gadd_ref : (1, EH_tot)        f32 (1.0 in gate cols, 0 elsewhere)
    # w2_ref   : (EH_tot, n_out)    f32; hidden rows = W2 stacked, gate rows = B2, pad = 0
    # y_ref    : (n_mol, n_out)     f32 per-core output (resident across atom tiles)
    # acc_ref  : (n_mol, EH_tot)    f32 fused scratch accumulator
    i = pl.program_id(1)            # atom-tile index within this core's slab

    @pl.when(i == 0)
    def _init():
        acc_ref[...] = jnp.zeros_like(acc_ref)

    x = x_ref[...]
    mxu_dt = x.dtype
    z = z_ref[...]                                               # (T, 1) int32

    # --- fused layer 1: one wide lane-dense MXU matmul over all element nets ---
    h1 = jnp.dot(x, w1_ref[...], preferred_element_type=jnp.float32)  # (T, EH_tot)
    h = _shifted_softplus(h1 + b1_ref[...])                           # f32 (VPU/EUP)

    # element-gated hidden + appended one-hot gate columns, one (T, EH_tot) slab.
    # gate/pad columns have zero W1/b1 so h==0 there; +gadd injects the one-hot.
    combined = jnp.where(z == erep_ref[...], h + gadd_ref[...], 0.0).astype(mxu_dt)

    # per-tile segment one-hot (molecules x atoms-in-tile), built on the fly
    n_mol = y_ref.shape[0]
    idx = idxm_ref[...]                                          # (1, T)
    seg = (jax.lax.broadcasted_iota(jnp.int32, (n_mol, idx.shape[1]), 0)
           == idx).astype(mxu_dt)                                # (M, T)

    # single fused aggregation matmul (hidden sums + per-element atom counts)
    acc_ref[...] += jnp.dot(seg, combined, preferred_element_type=jnp.float32)

    @pl.when(i == pl.num_programs(1) - 1)
    def _finalize():
        # [Hagg | counts] @ [W2 ; B2]  (tiny; runs once per core)
        y = jnp.dot(acc_ref[...], w2_ref[...], preferred_element_type=jnp.float32)
        y_ref[...] = y.astype(y_ref.dtype)


def elemental_atomwise(z, idx_m, x, params, elements, n_out=1, n_mol=None,
                       aggregation_mode="sum", tile_n=1024, num_cores=1,
                       mxu_dtype=jnp.bfloat16, vmem_limit_bytes=None):
    """Wrapper mirroring ElementalAtomwise.forward for flat atom inputs.

    Pass `n_mol` (number of molecules) to avoid a device->host sync and keep the
    whole op jit-friendly.  bf16 MXU operands are the default on all TPU
    generations (elementwise math stays f32); pass mxu_dtype=jnp.float32 for a
    bit-tighter (slower) path.  `num_cores=2` adds a 'parallel' grid axis for
    v7x's two TensorCores (harmless, serial, on single-core chips).

    NOTE: if n_mol < max(idx_m)+1, atoms of the out-of-range molecules are
    silently dropped (matches JAX scatter OOB-drop semantics).
    """
    assert aggregation_mode == "sum"   # TODO(synk): 'avg' not implemented
    assert tile_n % 128 == 0, "tile_n must be a multiple of 128 (lane-dense idx_m blocks)"
    assert num_cores >= 1
    w1, b1, w2, b2 = params
    n_elem, n_in, n_hid = w1.shape
    eh = n_elem * n_hid
    fused_w = eh + n_elem                            # hidden cols + gate cols
    eh_tot = ((fused_w + 127) // 128) * 128          # lane-dense fused width
    n_atoms = x.shape[0]
    if n_mol is None:
        n_mol = int(idx_m[-1]) + 1     # host-sync fallback only; prefer passing n_mol

    elems = jnp.asarray(elements, jnp.int32)

    # --- fused / stacked / lane-padded parameters (layout plumbing, done once) ---
    # column/row ordering is element-major then hidden: c = e*H + h
    w1_big = jnp.zeros((n_in, eh_tot), mxu_dtype).at[:, :eh].set(
        jnp.transpose(w1, (1, 0, 2)).reshape(n_in, eh).astype(mxu_dtype))
    b1_big = jnp.zeros((1, eh_tot), jnp.float32).at[:, :eh].set(
        b1.reshape(1, eh).astype(jnp.float32))
    erep_big = jnp.full((1, eh_tot), -1, jnp.int32)                 # -1 sentinel in pad cols
    erep_big = erep_big.at[0, :eh].set(jnp.repeat(elems, n_hid))
    erep_big = erep_big.at[0, eh:fused_w].set(elems)                # gate columns
    gadd_big = jnp.zeros((1, eh_tot), jnp.float32).at[0, eh:fused_w].set(1.0)
    w2_big = jnp.zeros((eh_tot, n_out), jnp.float32)
    w2_big = w2_big.at[:eh].set(w2.reshape(eh, n_out).astype(jnp.float32))
    w2_big = w2_big.at[eh:fused_w].set(b2.reshape(n_elem, n_out).astype(jnp.float32))

    # Pad the atom axis to a multiple of tile_n * num_cores.  Padded atoms get z=0,
    # which matches no element column (elements >= 1, pad sentinel -1), so their
    # contribution is exactly zero; their idx_m pad value (0) is therefore harmless.
    chunk = tile_n * num_cores
    n_pad = ((n_atoms + chunk - 1) // chunk) * chunk
    pad = n_pad - n_atoms
    xp = jnp.pad(x.astype(mxu_dtype), ((0, pad), (0, 0)))
    zp = jnp.pad(jnp.asarray(z, jnp.int32), (0, pad)).reshape(n_pad, 1)
    ip = jnp.pad(jnp.asarray(idx_m, jnp.int32), (0, pad)).reshape(1, n_pad)

    tiles_per_core = n_pad // chunk
    const = lambda c, i: (0, 0)

    # Explicit VMEM budget (generous; never below the 32 MiB scoped default).
    if vmem_limit_bytes is None:
        it = jnp.dtype(mxu_dtype).itemsize
        est = (2 * tile_n * max(n_in, 128) * it          # x tile (double-buffered)
               + 2 * tile_n * 128 * 4                    # z tile (lane-padded)
               + 2 * 8 * tile_n * 4                      # idx_m tile
               + 2 * (max(n_in, 8) * eh_tot * it         # W1_big
                      + 3 * 8 * eh_tot * 4               # b1/erep/gadd
                      + eh_tot * max(n_out, 128) * 4)    # W2_big
               + max(n_mol, 8) * eh_tot * 4              # fused accumulator
               + 4 * tile_n * eh_tot * 4                 # h1/h/combined temporaries
               + 2 * max(n_mol, 8) * tile_n * 4)         # seg one-hot + iota
        vmem_limit_bytes = max(int(1.5 * est) + (4 << 20), 32 << 20)

    grid_spec = pltpu.PrefetchScalarGridSpec(
        num_scalar_prefetch=0,
        grid=(num_cores, tiles_per_core),
        in_specs=[
            pl.BlockSpec((tile_n, n_in),
                         lambda c, i: (c * tiles_per_core + i, 0)),   # x tile
            pl.BlockSpec((tile_n, 1),
                         lambda c, i: (c * tiles_per_core + i, 0)),   # z tile
            pl.BlockSpec((1, tile_n),
                         lambda c, i: (0, c * tiles_per_core + i)),   # idx_m (lane-dense)
            pl.BlockSpec((n_in, eh_tot), const),                      # W1_big (resident)
            pl.BlockSpec((1, eh_tot), const),                         # b1_big
            pl.BlockSpec((1, eh_tot), const),                         # erep_big
            pl.BlockSpec((1, eh_tot), const),                         # gadd_big
            pl.BlockSpec((eh_tot, n_out), const),                     # W2_big (+B2)
        ],
        out_specs=pl.BlockSpec((pl.Squeezed(), n_mol, n_out),
                               lambda c, i: (c, 0, 0)),               # per-core partial
        scratch_shapes=[
            pltpu.VMEM((n_mol, eh_tot), jnp.float32),                 # fused accumulator
        ],
    )

    y = pl.pallas_call(
        _elemental_atomwise_kernel,
        out_shape=jax.ShapeDtypeStruct((num_cores, n_mol, n_out), jnp.float32),
        grid_spec=grid_spec,
        compiler_params=pltpu.CompilerParams(
            dimension_semantics=("parallel", "arbitrary"),
            vmem_limit_bytes=vmem_limit_bytes),
    )(xp, zp, ip, w1_big, b1_big, erep_big, gadd_big, w2_big)

    y = jnp.sum(y, axis=0)                       # combine per-core partials (cheap)
    return jnp.squeeze(y, -1) if n_out == 1 else y


def reference(z, idx_m, x, params, elements, n_out=1, n_mol=None):
    """Pure-JAX reference of the torch forward (sum aggregation)."""
    w1, b1, w2, b2 = params
    elements = jnp.asarray(elements, jnp.int32)
    gate = (jnp.asarray(z)[:, None] == elements[None, :]).astype(jnp.float32)   # (N, E)
    yi = jnp.zeros((x.shape[0], n_out), jnp.float32)
    for e in range(elements.shape[0]):
        h = x.astype(jnp.float32) @ w1[e] + b1[e]
        h = jax.nn.softplus(h) - LN2
        o = h @ w2[e] + b2[e]
        yi = yi + gate[:, e:e + 1] * o
    if n_mol is None:
        n_mol = int(idx_m[-1]) + 1
    y = jnp.zeros((n_mol, n_out), jnp.float32).at[idx_m].add(yi)
    return jnp.squeeze(y, -1) if n_out == 1 else y


def init_params(key, n_elements, n_in, n_hidden, n_out):
    k1, k2, k3, k4 = jax.random.split(key, 4)
    w1 = jax.random.normal(k1, (n_elements, n_in, n_hidden), jnp.float32) / np.sqrt(n_in)
    b1 = 0.1 * jax.random.normal(k2, (n_elements, 1, n_hidden), jnp.float32)
    w2 = jax.random.normal(k3, (n_elements, n_hidden, n_out), jnp.float32) / np.sqrt(n_hidden)
    b2 = 0.1 * jax.random.normal(k4, (n_elements, 1, n_out), jnp.float32)
    return w1, b1, w2, b2


if __name__ == "__main__":
    # Small, module-consistent shapes (multi-tile grid, ragged padding, and the
    # 2-core parallel axis all exercised).
    elements = [1, 6, 8]            # H, C, O
    n_in = 32
    n_hidden = n_in // 2            # pyramidal MLP, n_layers=2 -> hidden = n_in // 2
    n_out = 1
    n_mol = 4
    atoms_per_mol = 100
    n_atoms = n_mol * atoms_per_mol  # 400 atoms

    key = jax.random.PRNGKey(0)
    kp, kz, kx = jax.random.split(key, 3)

    params = init_params(kp, len(elements), n_in, n_hidden, n_out)
    z = jax.random.choice(kz, jnp.asarray(elements, jnp.int32), shape=(n_atoms,))
    x = jax.random.normal(kx, (n_atoms, n_in), jnp.float32)
    idx_m = jnp.repeat(jnp.arange(n_mol, dtype=jnp.int32), atoms_per_mol)

    y_ref = reference(z, idx_m, x, params, elements, n_out=n_out, n_mol=n_mol)

    # f32 MXU operands (tight-tolerance correctness path), 4 atom tiles, single core.
    y32 = elemental_atomwise(z, idx_m, x, params, elements, n_out=n_out,
                             n_mol=n_mol, tile_n=128, num_cores=1,
                             mxu_dtype=jnp.float32)
    y32 = jax.block_until_ready(y32)
    np.testing.assert_allclose(np.asarray(y32), np.asarray(y_ref), rtol=1e-4, atol=1e-4)

    # bf16 MXU operands (default perf path on all chips) + 2-core parallel axis
    # (v7x uses both TensorCores; serial and still correct on v5e/v6e).
    ybf2 = elemental_atomwise(z, idx_m, x, params, elements, n_out=n_out,
                              n_mol=n_mol, tile_n=128, num_cores=2,
                              mxu_dtype=jnp.bfloat16)
    ybf2 = jax.block_until_ready(ybf2)
    np.testing.assert_allclose(np.asarray(ybf2), np.asarray(y_ref), rtol=5e-2, atol=5e-1)

    # Default configuration (bf16, tile_n=1024, single core) — one big atom tile.
    ydef = elemental_atomwise(z, idx_m, x, params, elements, n_out=n_out, n_mol=n_mol)
    ydef = jax.block_until_ready(ydef)
    np.testing.assert_allclose(np.asarray(ydef), np.asarray(y_ref), rtol=5e-2, atol=5e-1)

    print("KERNEL_OK")
</pallas_src>

<mosaic_0001>
module attributes {stable_mosaic.version = 11 : i64} {
  func.func @_elemental_atomwise_kernel(%arg0: i32, %arg1: i32, %arg2: memref<128x32xf32, #tpu.memory_space<vmem>>, %arg3: memref<128x1xi32, #tpu.memory_space<vmem>>, %arg4: memref<1x128xi32, #tpu.memory_space<vmem>>, %arg5: memref<32x128xf32, #tpu.memory_space<vmem>>, %arg6: memref<1x128xf32, #tpu.memory_space<vmem>>, %arg7: memref<1x128xi32, #tpu.memory_space<vmem>>, %arg8: memref<1x128xf32, #tpu.memory_space<vmem>>, %arg9: memref<128x1xf32, #tpu.memory_space<vmem>>, %arg10: memref<1x4x1xf32, #tpu.memory_space<vmem>>, %arg11: memref<4x128xf32, #tpu.memory_space<vmem>>) attributes {dimension_semantics = [#tpu.dimension_semantics<parallel>, #tpu.dimension_semantics<arbitrary>], iteration_bounds = array<i64: 1, 4>, scalar_prefetch = 0 : i64, scratch_operands = 1 : i64, tpu.core_type = #tpu.core_type<tc>, window_params = [{transform_indices = @transform_0, window_bounds = array<i64: 128, 32>}, {transform_indices = @transform_1, window_bounds = array<i64: 128, 1>}, {transform_indices = @transform_2, window_bounds = array<i64: 1, 128>}, {pipeline_mode = #tpu.pipeline_mode<synchronous>, transform_indices = @transform_3, window_bounds = array<i64: 32, 128>}, {pipeline_mode = #tpu.pipeline_mode<synchronous>, transform_indices = @transform_4, window_bounds = array<i64: 1, 128>}, {pipeline_mode = #tpu.pipeline_mode<synchronous>, transform_indices = @transform_5, window_bounds = array<i64: 1, 128>}, {pipeline_mode = #tpu.pipeline_mode<synchronous>, transform_indices = @transform_6, window_bounds = array<i64: 1, 128>}, {pipeline_mode = #tpu.pipeline_mode<synchronous>, transform_indices = @transform_7, window_bounds = array<i64: 128, 1>}, {transform_indices = @transform_8, window_bounds = array<i64: 1, 4, 1>}]} {
    %c0_i32 = arith.constant 0 : i32
    %0 = arith.cmpi eq, %arg1, %c0_i32 : i32
    %1 = arith.extui %0 : i1 to i32
    %c0_i32_0 = arith.constant 0 : i32
    %2 = arith.cmpi ne, %1, %c0_i32_0 : i32
    scf.if %2 {
      %cst_24 = arith.constant 0.000000e+00 : f32
      %42 = vector.broadcast %cst_24 : f32 to vector<4x128xf32>
      %c0_25 = arith.constant 0 : index
      %c0_26 = arith.constant 0 : index
      %43 = vector.load %arg11[%c0_25, %c0_26] : memref<4x128xf32, #tpu.memory_space<vmem>>, vector<4x128xf32>
      tpu.vector_store %arg11[%c0_25, %c0_26], %42 {strides = array<i32>} : memref<4x128xf32, #tpu.memory_space<vmem>>, vector<4x128xf32>,
    } else {
    }
    %c0 = arith.constant 0 : index
    %c0_1 = arith.constant 0 : index
    %3 = vector.load %arg2[%c0, %c0_1] : memref<128x32xf32, #tpu.memory_space<vmem>>, vector<128x32xf32>
    %c0_2 = arith.constant 0 : index
    %c0_3 = arith.constant 0 : index
    %4 = vector.load %arg3[%c0_2, %c0_3] : memref<128x1xi32, #tpu.memory_space<vmem>>, vector<128x1xi32>
    %c0_4 = arith.constant 0 : index
    %c0_5 = arith.constant 0 : index
    %5 = vector.load %arg5[%c0_4, %c0_5] : memref<32x128xf32, #tpu.memory_space<vmem>>, vector<32x128xf32>
    %cst = arith.constant dense<0.000000e+00> : vector<128x128xf32>
    %6 = tpu.matmul %3, %5, %cst {dimension_numbers = #tpu.dot_dimension_numbers<[1], [0], [0], [1], [0, 0, 1, 1], [], []>} : vector<128x32xf32>, vector<32x128xf32>, vector<128x128xf32> -> vector<128x128xf32>
    %c0_6 = arith.constant 0 : index
    %c0_7 = arith.constant 0 : index
    %7 = vector.load %arg6[%c0_6, %c0_7] : memref<1x128xf32, #tpu.memory_space<vmem>>, vector<1x128xf32>
    %8 = vector.broadcast %7 : vector<1x128xf32> to vector<128x128xf32>
    %9 = arith.addf %6, %8 : vector<128x128xf32>
    %cst_8 = arith.constant 0.000000e+00 : f32
    %10 = vector.broadcast %cst_8 : f32 to vector<128x128xf32>
    %11 = arith.maximumf %9, %10 : vector<128x128xf32>
    %12 = math.absf %9 : vector<128x128xf32>
    %cst_9 = arith.constant 0.000000e+00 : f32
    %13 = vector.broadcast %cst_9 : f32 to vector<128x128xf32>
    %14 = arith.subf %13, %12 : vector<128x128xf32>
    %15 = math.exp %14 : vector<128x128xf32>
    %16 = math.log1p %15 : vector<128x128xf32>
    %17 = arith.addf %11, %16 : vector<128x128xf32>
    %cst_10 = arith.constant 0.693147182 : f32
    %18 = vector.broadcast %cst_10 : f32 to vector<128x128xf32>
    %19 = arith.subf %17, %18 : vector<128x128xf32>
    %c0_11 = arith.constant 0 : index
    %c0_12 = arith.constant 0 : index
    %20 = vector.load %arg7[%c0_11, %c0_12] : memref<1x128xi32, #tpu.memory_space<vmem>>, vector<1x128xi32>
    %21 = vector.broadcast %4 : vector<128x1xi32> to vector<128x128xi32>
    %22 = vector.broadcast %20 : vector<1x128xi32> to vector<128x128xi32>
    %23 = arith.cmpi eq, %21, %22 : vector<128x128xi32>
    %c0_13 = arith.constant 0 : index
    %c0_14 = arith.constant 0 : index
    %24 = vector.load %arg8[%c0_13, %c0_14] : memref<1x128xf32, #tpu.memory_space<vmem>>, vector<1x128xf32>
    %25 = vector.broadcast %24 : vector<1x128xf32> to vector<128x128xf32>
    %26 = arith.addf %19, %25 : vector<128x128xf32>
    %cst_15 = arith.constant 0.000000e+00 : f32
    %27 = vector.broadcast %cst_15 : f32 to vector<128x128xf32>
    %28 = arith.select %23, %26, %27 : vector<128x128xi1>, vector<128x128xf32>
    %c0_16 = arith.constant 0 : index
    %c0_17 = arith.constant 0 : index
    %29 = vector.load %arg4[%c0_16, %c0_17] : memref<1x128xi32, #tpu.memory_space<vmem>>, vector<1x128xi32>
    %30 = tpu.iota {dimensions = array<i32: 0>} : vector<4x128xi32>
    %31 = vector.broadcast %29 : vector<1x128xi32> to vector<4x128xi32>
    %32 = arith.cmpi eq, %30, %31 : vector<4x128xi32>
    %33 = arith.extui %32 : vector<4x128xi1> to vector<4x128xi32>
    %34 = arith.sitofp %33 : vector<4x128xi32> to vector<4x128xf32>
    %c0_18 = arith.constant 0 : index
    %c0_19 = arith.constant 0 : index
    %35 = vector.load %arg11[%c0_18, %c0_19] : memref<4x128xf32, #tpu.memory_space<vmem>>, vector<4x128xf32>
    %cst_20 = arith.constant dense<0.000000e+00> : vector<4x128xf32>
    %36 = tpu.matmul %34, %28, %cst_20 {dimension_numbers = #tpu.dot_dimension_numbers<[1], [0], [0], [1], [0, 0, 1, 1], [], []>} : vector<4x128xf32>, vector<128x128xf32>, vector<4x128xf32> -> vector<4x128xf32>
    %37 = arith.addf %35, %36 : vector<4x128xf32>
    %c0_21 = arith.constant 0 : index
    %c0_22 = arith.constant 0 : index
    %38 = vector.load %arg11[%c0_21, %c0_22] : memref<4x128xf32, #tpu.memory_space<vmem>>, vector<4x128xf32>
    tpu.vector_store %arg11[%c0_21, %c0_22], %37 {strides = array<i32>} : memref<4x128xf32, #tpu.memory_space<vmem>>, vector<4x128xf32>,
    %c3_i32 = arith.constant 3 : i32
    %39 = arith.cmpi eq, %arg1, %c3_i32 : i32
    %40 = arith.extui %39 : i1 to i32
    %c0_i32_23 = arith.constant 0 : i32
    %41 = arith.cmpi ne, %40, %c0_i32_23 : i32
    scf.if %41 {
      %c0_24 = arith.constant 0 : index
      %c0_25 = arith.constant 0 : index
      %42 = vector.load %arg11[%c0_24, %c0_25] : memref<4x128xf32, #tpu.memory_space<vmem>>, vector<4x128xf32>
      %c0_26 = arith.constant 0 : index
      %c0_27 = arith.constant 0 : index
      %43 = vector.load %arg9[%c0_26, %c0_27] : memref<128x1xf32, #tpu.memory_space<vmem>>, vector<128x1xf32>
      %cst_28 = arith.constant dense<0.000000e+00> : vector<4x1xf32>
      %44 = tpu.matmul %42, %43, %cst_28 {dimension_numbers = #tpu.dot_dimension_numbers<[1], [0], [0], [1], [0, 0, 1, 1], [], []>} : vector<4x128xf32>, vector<128x1xf32>, vector<4x1xf32> -> vector<4x1xf32>
      %c0_29 = arith.constant 0 : index
      %c0_30 = arith.constant 0 : index
      %c0_31 = arith.constant 0 : index
      %45 = vector.load %arg10[%c0_29, %c0_30, %c0_31] : memref<1x4x1xf32, #tpu.memory_space<vmem>>, vector<1x4x1xf32>
      %46 = vector.shape_cast %45 : vector<1x4x1xf32> to vector<4x1xf32>
      %47 = vector.shape_cast %44 : vector<4x1xf32> to vector<1x4x1xf32>
      tpu.vector_store %arg10[%c0_29, %c0_30, %c0_31], %47 {strides = array<i32>} : memref<1x4x1xf32, #tpu.memory_space<vmem>>, vector<1x4x1xf32>,
    } else {
    }
    return
  }
  func.func @transform_0(%arg0: i32, %arg1: i32) -> (i32, i32) {
    %c4_i32 = arith.constant 4 : i32
    %0 = arith.muli %arg0, %c4_i32 : i32
    %1 = arith.addi %0, %arg1 : i32
    %c0_i32 = arith.constant 0 : i32
    %c0_i32_0 = arith.constant 0 : i32
    return %1, %c0_i32 : i32, i32
  }
  func.func @transform_1(%arg0: i32, %arg1: i32) -> (i32, i32) {
    %c4_i32 = arith.constant 4 : i32
    %0 = arith.muli %arg0, %c4_i32 : i32
    %1 = arith.addi %0, %arg1 : i32
    %c0_i32 = arith.constant 0 : i32
    %c0_i32_0 = arith.constant 0 : i32
    return %1, %c0_i32 : i32, i32
  }
  func.func @transform_2(%arg0: i32, %arg1: i32) -> (i32, i32) {
    %c4_i32 = arith.constant 4 : i32
    %0 = arith.muli %arg0, %c4_i32 : i32
    %1 = arith.addi %0, %arg1 : i32
    %c0_i32 = arith.constant 0 : i32
    %c0_i32_0 = arith.constant 0 : i32
    return %c0_i32, %1 : i32, i32
  }
  func.func @transform_3(%arg0: i32, %arg1: i32) -> (i32, i32) {
    %c0_i32 = arith.constant 0 : i32
    %c0_i32_0 = arith.constant 0 : i32
    %c0_i32_1 = arith.constant 0 : i32
    return %c0_i32, %c0_i32_0 : i32, i32
  }
  func.func @transform_4(%arg0: i32, %arg1: i32) -> (i32, i32) {
    %c0_i32 = arith.constant 0 : i32
    %c0_i32_0 = arith.constant 0 : i32
    %c0_i32_1 = arith.constant 0 : i32
    return %c0_i32, %c0_i32_0 : i32, i32
  }
  func.func @transform_5(%arg0: i32, %arg1: i32) -> (i32, i32) {
    %c0_i32 = arith.constant 0 : i32
    %c0_i32_0 = arith.constant 0 : i32
    %c0_i32_1 = arith.constant 0 : i32
    return %c0_i32, %c0_i32_0 : i32, i32
  }
  func.func @transform_6(%arg0: i32, %arg1: i32) -> (i32, i32) {
    %c0_i32 = arith.constant 0 : i32
    %c0_i32_0 = arith.constant 0 : i32
    %c0_i32_1 = arith.constant 0 : i32
    return %c0_i32, %c0_i32_0 : i32, i32
  }
  func.func @transform_7(%arg0: i32, %arg1: i32) -> (i32, i32) {
    %c0_i32 = arith.constant 0 : i32
    %c0_i32_0 = arith.constant 0 : i32
    %c0_i32_1 = arith.constant 0 : i32
    return %c0_i32, %c0_i32_0 : i32, i32
  }
  func.func @transform_8(%arg0: i32, %arg1: i32) -> (i32, i32, i32) {
    %c0_i32 = arith.constant 0 : i32
    %c0_i32_0 = arith.constant 0 : i32
    %c0_i32_1 = arith.constant 0 : i32
    return %arg0, %c0_i32, %c0_i32_0 : i32, i32, i32
  }
}

</mosaic_0001>

<llo_original>
// kernel: tpu_custom_call.1
$region0: #{tpu_custom_call.1}
  #allocation0 [shape = 'u32[]', space=smem, size = 0x4, offset = 0x4, fixed_abs, tag = 'smem constant byte address 0x4 - core index']
  #allocation1 [shape = 'u32[72,128]{1,0:T(1,128)}', space=vmem, size = 0x9000, scoped, tag = 'internal scratch']
  #allocation2 [shape = 'f32[4,128]{1,0:T(4,128)}', space=vmem, size = 0x800, scoped, tag = 'scratch operand']
  %s0 = inlined_call_operand.vmem [shape: f32[512,32], index: 0, kind: input, shape index: {}]
  %s1 = inlined_call_operand.vmem [shape: s32[512,1], index: 1, kind: input, shape index: {}]
  %s2 = inlined_call_operand.vmem [shape: s32[1,512], index: 2, kind: input, shape index: {}]
  %s3 = inlined_call_operand.vmem [shape: f32[32,128], index: 3, kind: input, shape index: {}]
  %s4 = inlined_call_operand.vmem [shape: f32[1,128], index: 4, kind: input, shape index: {}]
  %s5 = inlined_call_operand.vmem [shape: s32[1,128], index: 5, kind: input, shape index: {}]
  %s6 = inlined_call_operand.vmem [shape: f32[1,128], index: 6, kind: input, shape index: {}]
  %s7 = inlined_call_operand.vmem [shape: f32[128,1], index: 7, kind: input, shape index: {}]
  %s8 = inlined_call_operand.vmem [shape: f32[1,4,1], index: 8, kind: output, shape index: {}]
  %s9 = sld [smem:[#allocation0]]
  $region73: #{tpu_custom_call.1} parent=0
    _
  %s11 = ssub.s32 1, %s9
  %s12 = scalar_select 0, %s11, %s9
  loop: start=0, step=1, limit=6
  $region2: #{tpu_custom_call.1} parent=0 // loop_pre_header
    _
  $region3: #{tpu_custom_call.1} parent=0 // loop_header
    %s14 = sphi 0, %s18
    %p15 = scmp.ge.s32.totalorder %s14, 6
    %s21 = sphi 0, %s33
    %s22 = sphi 0, %s29
    %s23 = sphi 0, %s21
    %s24 = sphi 0, %s22
    %s25 = sphi 0, %s23
    %s26 = sphi 0, %s24
    %s40 = sphi 0, %s42
    %s43 = sphi 0, %s40
    %s44 = sphi 0, %s43
    %s60 = sphi 0, %s44
    %s70 = sphi 0, %s72
    %s73 = sphi 0, %s70
    %s74 = sphi 0, %s73
    %s90 = sphi 0, %s74
    %s100 = sphi 0, %s102
    %s103 = sphi 0, %s100
    %s104 = sphi 0, %s103
    %s120 = sphi 0, %s104
    %s124 = sphi 0, %s124
    %s126 = sphi 0, %s124
    %s127 = sphi 0, %s126
    %s141 = sphi 0, %s127
    %s145 = sphi 0, %s145
    %s147 = sphi 0, %s145
    %s148 = sphi 0, %s147
    %s162 = sphi 0, %s148
    %s166 = sphi 0, %s166
    %s168 = sphi 0, %s166
    %s169 = sphi 0, %s168
    %s183 = sphi 0, %s169
    %s187 = sphi 0, %s187
    %s189 = sphi 0, %s187
    %s190 = sphi 0, %s189
    %s204 = sphi 0, %s190
    %s208 = sphi 0, %s208
    %s210 = sphi 0, %s208
    %s211 = sphi 0, %s210
    %s225 = sphi 0, %s211
    %s231 = sphi 0, %s233
    %s234 = sphi 0, %s231
    %s235 = sphi 0, %s234
    %s251 = sphi 0, %s235
  $region4: #{tpu_custom_call.1} parent=0 // loop_header_branch
    %17 = sbr.rel (%p15) target = $region8
  $region5: #{tpu_custom_call.1} parent=0 // loop_body
    %s19 = ssub.s32 %s14, 1
    %s20 = ssub.s32 %s14, 2
    %s27 = sadd.s32 1, %s22
    %p28 = scmp.ge.s32.totalorder %s27, 4
    %s29 = scalar_select %p28, 0, %s27
    %s30 = sadd.s32 1, %s21
    %s31 = scalar_select %p28, %s30, %s21
    %p32 = scmp.ge.s32.totalorder %s31, 1
    %s33 = scalar_select %p32, 0, %s31
    %s34 = smul.u32 %s21, 4
    %s35 = sadd.s32 %s34, %s22
    %s36 = smul.u32 %s33, 4
    %s37 = sadd.s32 %s36, %s29
    %s38 = ssub.s32 %s35, %s37
    %p39 = scmp.eq.s32.totalorder %s38, 0
    %s41 = sadd.s32 %s40, 1
    %s42 = scalar_select %p39, %s40, %s41
    %p45 = pneg %p39
    %p46 = scmp.eq.s32.totalorder %s14, 3
    %p47 = por %p45, %p46
    %p48 = scmp.ne.s32.totalorder %s40, %s43
    %p49 = scmp.eq.s32.totalorder %s14, 0
    %p50 = por %p48, %p49
    %p51 = scmp.ne.s32.totalorder %s40, %s43
    %p52 = scmp.eq.s32.totalorder %s19, 3
    %p53 = por %p51, %p52
    %p54 = scmp.ne.s32.totalorder %s43, %s44
    %p55 = scmp.eq.s32.totalorder %s19, 0
    %p56 = por %p54, %p55
    %p57 = scmp.ne.s32.totalorder %s43, %s44
    %p58 = scmp.eq.s32.totalorder %s20, 3
    %p59 = por %p57, %p58
    %p61 = scmp.ne.s32.totalorder %s44, %s60
    %p62 = scmp.eq.s32.totalorder %s20, 0
    %p63 = por %p61, %p62
    %s64 = smul.u32 %s21, 4
    %s65 = sadd.s32 %s64, %s22
    %s66 = smul.u32 %s33, 4
    %s67 = sadd.s32 %s66, %s29
    %s68 = ssub.s32 %s65, %s67
    %p69 = scmp.eq.s32.totalorder %s68, 0
    %s71 = sadd.s32 %s70, 1
    %s72 = scalar_select %p69, %s70, %s71
    %p75 = pneg %p69
    %p76 = scmp.eq.s32.totalorder %s14, 3
    %p77 = por %p75, %p76
    %p78 = scmp.ne.s32.totalorder %s70, %s73
    %p79 = scmp.eq.s32.totalorder %s14, 0
    %p80 = por %p78, %p79
    %p81 = scmp.ne.s32.totalorder %s70, %s73
    %p82 = scmp.eq.s32.totalorder %s19, 3
    %p83 = por %p81, %p82
    %p84 = scmp.ne.s32.totalorder %s73, %s74
    %p85 = scmp.eq.s32.totalorder %s19, 0
    %p86 = por %p84, %p85
    %p87 = scmp.ne.s32.totalorder %s73, %s74
    %p88 = scmp.eq.s32.totalorder %s20, 3
    %p89 = por %p87, %p88
    %p91 = scmp.ne.s32.totalorder %s74, %s90
    %p92 = scmp.eq.s32.totalorder %s20, 0
    %p93 = por %p91, %p92
    %s94 = smul.u32 %s21, 4
    %s95 = sadd.s32 %s94, %s22
    %s96 = smul.u32 %s33, 4
    %s97 = sadd.s32 %s96, %s29
    %s98 = ssub.s32 %s95, %s97
    %p99 = scmp.eq.s32.totalorder %s98, 0
    %s101 = sadd.s32 %s100, 1
    %s102 = scalar_select %p99, %s100, %s101
    %p105 = pneg %p99
    %p106 = scmp.eq.s32.totalorder %s14, 3
    %p107 = por %p105, %p106
    %p108 = scmp.ne.s32.totalorder %s100, %s103
    %p109 = scmp.eq.s32.totalorder %s14, 0
    %p110 = por %p108, %p109
    %p111 = scmp.ne.s32.totalorder %s100, %s103
    %p112 = scmp.eq.s32.totalorder %s19, 3
    %p113 = por %p111, %p112
    %p114 = scmp.ne.s32.totalorder %s103, %s104
    %p115 = scmp.eq.s32.totalorder %s19, 0
    %p116 = por %p114, %p115
    %p117 = scmp.ne.s32.totalorder %s103, %s104
    %p118 = scmp.eq.s32.totalorder %s20, 3
    %p119 = por %p117, %p118
    %p121 = scmp.ne.s32.totalorder %s104, %s120
    %p122 = scmp.eq.s32.totalorder %s20, 0
    %p123 = por %p121, %p122
    %s125 = sadd.s32 %s124, 1
    %p128 = scmp.eq.s32.totalorder %s14, 3
    %p129 = scmp.ne.s32.totalorder %s124, %s126
    %p130 = scmp.eq.s32.totalorder %s14, 0
    %p131 = por %p129, %p130
    %p132 = scmp.ne.s32.totalorder %s124, %s126
    %p133 = scmp.eq.s32.totalorder %s19, 3
    %p134 = por %p132, %p133
    %p135 = scmp.ne.s32.totalorder %s126, %s127
    %p136 = scmp.eq.s32.totalorder %s19, 0
    %p137 = por %p135, %p136
    %p138 = scmp.ne.s32.totalorder %s126, %s127
    %p139 = scmp.eq.s32.totalorder %s20, 3
    %p140 = por %p138, %p139
    %p142 = scmp.ne.s32.totalorder %s127, %s141
    %p143 = scmp.eq.s32.totalorder %s20, 0
    %p144 = por %p142, %p143
    %s146 = sadd.s32 %s145, 1
    %p149 = scmp.eq.s32.totalorder %s14, 3
    %p150 = scmp.ne.s32.totalorder %s145, %s147
    %p151 = scmp.eq.s32.totalorder %s14, 0
    %p152 = por %p150, %p151
    %p153 = scmp.ne.s32.totalorder %s145, %s147
    %p154 = scmp.eq.s32.totalorder %s19, 3
    %p155 = por %p153, %p154
    %p156 = scmp.ne.s32.totalorder %s147, %s148
    %p157 = scmp.eq.s32.totalorder %s19, 0
    %p158 = por %p156, %p157
    %p159 = scmp.ne.s32.totalorder %s147, %s148
    %p160 = scmp.eq.s32.totalorder %s20, 3
    %p161 = por %p159, %p160
    %p163 = scmp.ne.s32.totalorder %s148, %s162
    %p164 = scmp.eq.s32.totalorder %s20, 0
    %p165 = por %p163, %p164
    %s167 = sadd.s32 %s166, 1
    %p170 = scmp.eq.s32.totalorder %s14, 3
    %p171 = scmp.ne.s32.totalorder %s166, %s168
    %p172 = scmp.eq.s32.totalorder %s14, 0
    %p173 = por %p171, %p172
    %p174 = scmp.ne.s32.totalorder %s166, %s168
    %p175 = scmp.eq.s32.totalorder %s19, 3
    %p176 = por %p174, %p175
    %p177 = scmp.ne.s32.totalorder %s168, %s169
    %p178 = scmp.eq.s32.totalorder %s19, 0
    %p179 = por %p177, %p178
    %p180 = scmp.ne.s32.totalorder %s168, %s169
    %p181 = scmp.eq.s32.totalorder %s20, 3
    %p182 = por %p180, %p181
    %p184 = scmp.ne.s32.totalorder %s169, %s183
    %p185 = scmp.eq.s32.totalorder %s20, 0
    %p186 = por %p184, %p185
    %s188 = sadd.s32 %s187, 1
    %p191 = scmp.eq.s32.totalorder %s14, 3
    %p192 = scmp.ne.s32.totalorder %s187, %s189
    %p193 = scmp.eq.s32.totalorder %s14, 0
    %p194 = por %p192, %p193
    %p195 = scmp.ne.s32.totalorder %s187, %s189
    %p196 = scmp.eq.s32.totalorder %s19, 3
    %p197 = por %p195, %p196
    %p198 = scmp.ne.s32.totalorder %s189, %s190
    %p199 = scmp.eq.s32.totalorder %s19, 0
    %p200 = por %p198, %p199
    %p201 = scmp.ne.s32.totalorder %s189, %s190
    %p202 = scmp.eq.s32.totalorder %s20, 3
    %p203 = por %p201, %p202
    %p205 = scmp.ne.s32.totalorder %s190, %s204
    %p206 = scmp.eq.s32.totalorder %s20, 0
    %p207 = por %p205, %p206
    %s209 = sadd.s32 %s208, 1
    %p212 = scmp.eq.s32.totalorder %s14, 3
    %p213 = scmp.ne.s32.totalorder %s208, %s210
    %p214 = scmp.eq.s32.totalorder %s14, 0
    %p215 = por %p213, %p214
    %p216 = scmp.ne.s32.totalorder %s208, %s210
    %p217 = scmp.eq.s32.totalorder %s19, 3
    %p218 = por %p216, %p217
    %p219 = scmp.ne.s32.totalorder %s210, %s211
    %p220 = scmp.eq.s32.totalorder %s19, 0
    %p221 = por %p219, %p220
    %p222 = scmp.ne.s32.totalorder %s210, %s211
    %p223 = scmp.eq.s32.totalorder %s20, 3
    %p224 = por %p222, %p223
    %p226 = scmp.ne.s32.totalorder %s211, %s225
    %p227 = scmp.eq.s32.totalorder %s20, 0
    %p228 = por %p226, %p227
    %s229 = ssub.s32 %s21, %s33
    %p230 = scmp.eq.s32.totalorder %s229, 0
    %s232 = sadd.s32 %s231, 1
    %s233 = scalar_select %p230, %s231, %s232
    %p236 = pneg %p230
    %p237 = scmp.eq.s32.totalorder %s14, 3
    %p238 = por %p236, %p237
    %p239 = scmp.ne.s32.totalorder %s231, %s234
    %p240 = scmp.eq.s32.totalorder %s14, 0
    %p241 = por %p239, %p240
    %p242 = scmp.ne.s32.totalorder %s231, %s234
    %p243 = scmp.eq.s32.totalorder %s19, 3
    %p244 = por %p242, %p243
    %p245 = scmp.ne.s32.totalorder %s234, %s235
    %p246 = scmp.eq.s32.totalorder %s19, 0
    %p247 = por %p245, %p246
    %p248 = scmp.ne.s32.totalorder %s234, %s235
    %p249 = scmp.eq.s32.totalorder %s20, 3
    %p250 = por %p248, %p249
    %p252 = scmp.ne.s32.totalorder %s235, %s251
    %p253 = scmp.eq.s32.totalorder %s20, 0
    %p254 = por %p252, %p253
    %p255 = scmp.le.s32.totalorder 1, %s14
    %p256 = scmp.lt.s32.totalorder %s14, 5
    %p257 = pnand %p255, %p256
    %p258 = pneg %p257
    // Predicated region
    $region9: #{tpu_custom_call.1} parent=5 // pred_check
      _
    $region10: #{tpu_custom_call.1} parent=5 // pred_check_branch
      %260 = sbr.rel (%p257) target = $region12
    $region11: #{tpu_custom_call.1} parent=5 // pred_region
      %s261 = ssub.s32 %s14, 1
      // Predicated region
      $region13: #{tpu_custom_call.1} parent=11 // pred_check
        %p262 = pneg %p137
      $region14: #{tpu_custom_call.1} parent=11 // pred_check_branch
        %264 = sbr.rel (%p262) target = $region16
      $region15: #{tpu_custom_call.1} parent=11 // pred_region
        _
      $region16: #{tpu_custom_call.1} parent=11 // pred_fallthru
        _
      // Predicated region
      $region17: #{tpu_custom_call.1} parent=11 // pred_check
        %p265 = pneg %p158
      $region18: #{tpu_custom_call.1} parent=11 // pred_check_branch
        %267 = sbr.rel (%p265) target = $region20
      $region19: #{tpu_custom_call.1} parent=11 // pred_region
        _
      $region20: #{tpu_custom_call.1} parent=11 // pred_fallthru
        _
      // Predicated region
      $region21: #{tpu_custom_call.1} parent=11 // pred_check
        %p268 = pneg %p179
      $region22: #{tpu_custom_call.1} parent=11 // pred_check_branch
        %270 = sbr.rel (%p268) target = $region24
      $region23: #{tpu_custom_call.1} parent=11 // pred_region
        _
      $region24: #{tpu_custom_call.1} parent=11 // pred_fallthru
        _
      // Predicated region
      $region25: #{tpu_custom_call.1} parent=11 // pred_check
        %p271 = pneg %p200
      $region26: #{tpu_custom_call.1} parent=11 // pred_check_branch
        %273 = sbr.rel (%p271) target = $region28
      $region27: #{tpu_custom_call.1} parent=11 // pred_region
        _
      $region28: #{tpu_custom_call.1} parent=11 // pred_fallthru
        _
      // Predicated region
      $region29: #{tpu_custom_call.1} parent=11 // pred_check
        %p274 = pneg %p221
      $region30: #{tpu_custom_call.1} parent=11 // pred_check_branch
        %276 = sbr.rel (%p274) target = $region32
      $region31: #{tpu_custom_call.1} parent=11 // pred_region
        _
      $region32: #{tpu_custom_call.1} parent=11 // pred_fallthru
        _
    $region12: #{tpu_custom_call.1} parent=5 // pred_fallthru
      _
    %p277 = scmp.lt.s32.totalorder %s14, 4
    // Predicated region
    $region33: #{tpu_custom_call.1} parent=5 // pred_check
      %p278 = pneg %p277
    $region34: #{tpu_custom_call.1} parent=5 // pred_check_branch
      %280 = sbr.rel (%p278) target = $region36
    $region35: #{tpu_custom_call.1} parent=5 // pred_region
      // Predicated region
      $region37: #{tpu_custom_call.1} parent=35 // pred_check
        %p281 = pneg %p50
      $region38: #{tpu_custom_call.1} parent=35 // pred_check_branch
        %283 = sbr.rel (%p281) target = $region40
      $region39: #{tpu_custom_call.1} parent=35 // pred_region
        %s284 = smul.u32 %s21, 4
        %s285 = sadd.s32 %s284, %s22
        %s286 = smul.u32 16, %s285
        %p287 = scmp.lt.s32.totalorder %s286, 63
        %s288 = scalar_select %p287, %s286, 63
        %s289 = smul.addr %s288, 8
        %s290 = scalar_lea.vmem %s0, %s289
        %s291 = smul.u32 %s21, 4
        %s292 = sadd.s32 %s291, %s22
        %s293 = smul.u32 16, %s292
      $region40: #{tpu_custom_call.1} parent=35 // pred_fallthru
        _
      // Predicated region
      $region41: #{tpu_custom_call.1} parent=35 // pred_check
        %p294 = pneg %p80
      $region42: #{tpu_custom_call.1} parent=35 // pred_check_branch
        %296 = sbr.rel (%p294) target = $region44
      $region43: #{tpu_custom_call.1} parent=35 // pred_region
        %s297 = smul.u32 %s21, 4
        %s298 = sadd.s32 %s297, %s22
        %s299 = smul.u32 16, %s298
        %p300 = scmp.lt.s32.totalorder %s299, 63
        %s301 = scalar_select %p300, %s299, 63
        %s302 = smul.addr %s301, 8
        %s303 = scalar_lea.vmem %s1, %s302
        %s304 = smul.u32 %s21, 4
        %s305 = sadd.s32 %s304, %s22
        %s306 = smul.u32 16, %s305
      $region44: #{tpu_custom_call.1} parent=35 // pred_fallthru
        _
      // Predicated region
      $region45: #{tpu_custom_call.1} parent=35 // pred_check
        %p307 = pneg %p110
      $region46: #{tpu_custom_call.1} parent=35 // pred_check_branch
        %309 = sbr.rel (%p307) target = $region48
      $region47: #{tpu_custom_call.1} parent=35 // pred_region
        %s310 = smul.u32 %s21, 4
        %s311 = sadd.s32 %s310, %s22
        %p312 = scmp.lt.s32.totalorder %s311, 3
        %s313 = scalar_select %p312, %s311, 3
        %s314 = scalar_lea.vmem %s2, %s313
        %s315 = smul.u32 %s21, 4
        %s316 = sadd.s32 %s315, %s22
      $region48: #{tpu_custom_call.1} parent=35 // pred_fallthru
        _
    $region36: #{tpu_custom_call.1} parent=5 // pred_fallthru
      _
    %p317 = scmp.le.s32.totalorder 1, %s14
    %p318 = scmp.lt.s32.totalorder %s14, 5
    %p319 = pnand %p317, %p318
    %p320 = pneg %p319
    // Predicated region
    $region49: #{tpu_custom_call.1} parent=5 // pred_check
      _
    $region50: #{tpu_custom_call.1} parent=5 // pred_check_branch
      %322 = sbr.rel (%p319) target = $region52
    $region51: #{tpu_custom_call.1} parent=5 // pred_region
      %s323 = ssub.s32 %s14, 1
      %s324 = smul.u32 %s23, 4
      %s325 = sadd.s32 %s324, %s24
      %s326 = smul.u32 16, %s325
      %p327 = scmp.lt.s32.totalorder %s326, 63
      %s328 = scalar_select %p327, %s326, 63
      %s329 = smul.addr %s328, 8
      %s330 = scalar_lea.vmem %s0, %s329
      %p331 = pneg %p56
      %p332 = pneg %p53
      %s333 = smul.u32 %s23, 4
      %s334 = sadd.s32 %s333, %s24
      %s335 = smul.u32 16, %s334
      %p336 = scmp.lt.s32.totalorder %s335, 63
      %s337 = scalar_select %p336, %s335, 63
      %s338 = smul.addr %s337, 8
      %s339 = scalar_lea.vmem %s1, %s338
      %p340 = pneg %p86
      %p341 = pneg %p83
      %s342 = smul.u32 %s23, 4
      %s343 = sadd.s32 %s342, %s24
      %p344 = scmp.lt.s32.totalorder %s343, 3
      %s345 = scalar_select %p344, %s343, 3
      %s346 = scalar_lea.vmem %s2, %s345
      %p347 = pneg %p116
      %p348 = pneg %p113
      %p349 = pneg %p137
      %p350 = pneg %p134
      %p351 = pneg %p158
      %p352 = pneg %p155
      %p353 = pneg %p179
      %p354 = pneg %p176
      %p355 = pneg %p200
      %p356 = pneg %p197
      %p357 = pneg %p221
      %p358 = pneg %p218
      %p359 = pneg %p247
      %p360 = pneg %p244
      %p361 = scmp.lt.s32.totalorder %s23, 0
      %s362 = scalar_select %p361, %s23, 0
      %s363 = smul.addr %s362, 4
      %s364 = scalar_lea.vmem %s8, %s363
      %s365 = smul.u32 %s23, 4
      %s366 = sadd.s32 %s365, %s24
      %s367 = smul.u32 16, %s366
      %p368 = scmp.lt.s32.totalorder %s367, 63
      %s369 = scalar_select %p368, %s367, 63
      %s370 = smul.addr %s369, 8
      %s371 = scalar_lea.vmem %s0, %s370
      %s372 = smul.u32 %s23, 4
      %s373 = sadd.s32 %s372, %s24
      %s374 = smul.u32 16, %s373
      %s375 = smul.u32 %s23, 4
      %s376 = sadd.s32 %s375, %s24
      %s377 = smul.u32 16, %s376
      %p378 = scmp.lt.s32.totalorder %s377, 63
      %s379 = scalar_select %p378, %s377, 63
      %s380 = smul.addr %s379, 8
      %s381 = scalar_lea.vmem %s1, %s380
      %s382 = smul.u32 %s23, 4
      %s383 = sadd.s32 %s382, %s24
      %s384 = smul.u32 16, %s383
      %s385 = smul.u32 %s23, 4
      %s386 = sadd.s32 %s385, %s24
      %p387 = scmp.lt.s32.totalorder %s386, 3
      %s388 = scalar_select %p387, %s386, 3
      %s389 = scalar_lea.vmem %s2, %s388
      %s390 = smul.u32 %s23, 4
      %s391 = sadd.s32 %s390, %s24
      %p392 = scmp.lt.s32.totalorder %s23, 0
      %s393 = scalar_select %p392, %s23, 0
      %s394 = smul.addr %s393, 4
      %s395 = scalar_lea.vmem %s8, %s394
      %p396 = scmp.eq.s32.totalorder %s24, 0
      // Predicated region
      $region53: #{tpu_custom_call.1} parent=51 // pred_check
        %p397 = pneg %p396
      $region54: #{tpu_custom_call.1} parent=51 // pred_check_branch
        %399 = sbr.rel (%p397) target = $region56
      $region55: #{tpu_custom_call.1} parent=51 // pred_region
        %400 = vst [vmem:[#allocation2] sm:$0xf] 0.0
      $region56: #{tpu_custom_call.1} parent=51 // pred_fallthru
        _
      %v401 = vld [vmem:[%s371] sm:$0xff]
      %v402 = vld [vmem:[%s371 + $0x8] sm:$0xff]
      %v403 = vld [vmem:[%s371 + $0x10] sm:$0xff]
      %v404 = vld [vmem:[%s371 + $0x18] sm:$0xff]
      %v405 = vld [vmem:[%s371 + $0x20] sm:$0xff]
      %v406 = vld [vmem:[%s371 + $0x28] sm:$0xff]
      %v407 = vld [vmem:[%s371 + $0x30] sm:$0xff]
      %v408 = vld [vmem:[%s371 + $0x38] sm:$0xff]
      %v409 = vld [vmem:[%s371 + $0x40] sm:$0xff]
      %v410 = vld [vmem:[%s371 + $0x48] sm:$0xff]
      %v411 = vld [vmem:[%s371 + $0x50] sm:$0xff]
      %v412 = vld [vmem:[%s371 + $0x58] sm:$0xff]
      %v413 = vld [vmem:[%s371 + $0x60] sm:$0xff]
      %v414 = vld [vmem:[%s371 + $0x68] sm:$0xff]
      %v415 = vld [vmem:[%s371 + $0x70] sm:$0xff]
      %v416 = vld [vmem:[%s371 + $0x78] sm:$0xff]
      %v417 = vld [vmem:[%s381] sm:$0xff]
      %v418 = vld [vmem:[%s381 + $0x8] sm:$0xff]
      %v419 = vld [vmem:[%s381 + $0x10] sm:$0xff]
      %v420 = vld [vmem:[%s381 + $0x18] sm:$0xff]
      %v421 = vld [vmem:[%s381 + $0x20] sm:$0xff]
      %v422 = vld [vmem:[%s381 + $0x28] sm:$0xff]
      %v423 = vld [vmem:[%s381 + $0x30] sm:$0xff]
      %v424 = vld [vmem:[%s381 + $0x38] sm:$0xff]
      %v425 = vld [vmem:[%s381 + $0x40] sm:$0xff]
      %v426 = vld [vmem:[%s381 + $0x48] sm:$0xff]
      %v427 = vld [vmem:[%s381 + $0x50] sm:$0xff]
      %v428 = vld [vmem:[%s381 + $0x58] sm:$0xff]
      %v429 = vld [vmem:[%s381 + $0x60] sm:$0xff]
      %v430 = vld [vmem:[%s381 + $0x68] sm:$0xff]
      %v431 = vld [vmem:[%s381 + $0x70] sm:$0xff]
      %v432 = vld [vmem:[%s381 + $0x78] sm:$0xff]
      %v433 = vld [vmem:[%s3] sm:$0xff]
      %v434 = vld [vmem:[%s3 + $0x8] sm:$0xff]
      %v435 = vld [vmem:[%s3 + $0x10] sm:$0xff]
      %v436 = vld [vmem:[%s3 + $0x18] sm:$0xff]
      %v437 = vld [vmem:[%s4] sm:$0x1]
      %v439 = vperm.slane %v437, 0
      %vm441 = vcmask 261120
      %v443 = vsel %vm441, %v401, 0
      %v446 = vsel %vm441, %v402, 0
      %v449 = vsel %vm441, %v403, 0
      %v452 = vsel %vm441, %v404, 0
      %v455 = vsel %vm441, %v405, 0
      %v458 = vsel %vm441, %v406, 0
      %v461 = vsel %vm441, %v407, 0
      %v464 = vsel %vm441, %v408, 0
      %v467 = vsel %vm441, %v409, 0
      %v470 = vsel %vm441, %v410, 0
      %v473 = vsel %vm441, %v411, 0
      %v476 = vsel %vm441, %v412, 0
      %v479 = vsel %vm441, %v413, 0
      %v482 = vsel %vm441, %v414, 0
      %v485 = vsel %vm441, %v415, 0
      %v488 = vsel %vm441, %v416, 0
      %490 = vmatpush.msra.mxu0 0.0
      %491 = vmatpush.msra.mxu0 0.0
      %492 = vmatpush.msra.mxu0 0.0
      %493 = vmatpush.msra.mxu0 0.0
      %494 = vmatpush.msra.mxu0 0.0
      %495 = vmatpush.msra.mxu0 0.0
      %496 = vmatpush.msra.mxu0 0.0
      %497 = vmatpush.msra.mxu0 0.0
      %498 = vmatpush.msra.mxu0 0.0
      %499 = vmatpush.msra.mxu0 0.0
      %500 = vmatpush.msra.mxu0 0.0
      %501 = vmatpush.msra.mxu0 0.0
      %502 = vmatpush.msra.mxu0 %v436
      %503 = vmatpush.msra.mxu0 %v435
      %504 = vmatpush.msra.mxu0 %v434
      %505 = vmatpush.msra.mxu0 %v433
      %506 = vmatmul.f32.gmra.mxu0 %v443
      %v507 = vpop.f32.mrf.mxu0
      %v508 = vadd.f32 %v439, %v507
      %509 = vmatmul.f32.gmra.mxu0 %v446
      %v510 = vpop.f32.mrf.mxu0
      %v511 = vadd.f32 %v439, %v510
      %512 = vmatmul.f32.gmra.mxu0 %v449
      %v513 = vpop.f32.mrf.mxu0
      %v514 = vadd.f32 %v439, %v513
      %515 = vmatmul.f32.gmra.mxu0 %v452
      %v516 = vpop.f32.mrf.mxu0
      %v517 = vadd.f32 %v439, %v516
      %518 = vmatmul.f32.gmra.mxu0 %v455
      %v519 = vpop.f32.mrf.mxu0
      %v520 = vadd.f32 %v439, %v519
      %521 = vmatmul.f32.gmra.mxu0 %v458
      %v522 = vpop.f32.mrf.mxu0
      %v523 = vadd.f32 %v439, %v522
      %524 = vmatmul.f32.gmra.mxu0 %v461
      %v525 = vpop.f32.mrf.mxu0
      %v526 = vadd.f32 %v439, %v525
      %527 = vmatmul.f32.gmra.mxu0 %v464
      %v528 = vpop.f32.mrf.mxu0
      %v529 = vadd.f32 %v439, %v528
      %530 = vmatmul.f32.gmra.mxu0 %v467
      %v531 = vpop.f32.mrf.mxu0
      %v532 = vadd.f32 %v439, %v531
      %533 = vmatmul.f32.gmra.mxu0 %v470
      %v534 = vpop.f32.mrf.mxu0
      %v535 = vadd.f32 %v439, %v534
      %536 = vmatmul.f32.gmra.mxu0 %v473
      %v537 = vpop.f32.mrf.mxu0
      %v538 = vadd.f32 %v439, %v537
      %539 = vmatmul.f32.gmra.mxu0 %v476
      %v540 = vpop.f32.mrf.mxu0
      %v541 = vadd.f32 %v439, %v540
      %542 = vmatmul.f32.gmra.mxu0 %v479
      %v543 = vpop.f32.mrf.mxu0
      %v544 = vadd.f32 %v439, %v543
      %545 = vmatmul.f32.gmra.mxu0 %v482
      %v546 = vpop.f32.mrf.mxu0
      %v547 = vadd.f32 %v439, %v546
      %548 = vmatmul.f32.gmra.mxu0 %v485
      %v549 = vpop.f32.mrf.mxu0
      %v550 = vadd.f32 %v439, %v549
      %551 = vmatmul.f32.gmra.mxu0 %v488
      %v552 = vpop.f32.mrf.mxu0
      %v553 = vadd.f32 %v439, %v552
      %554 = vdwg.mxu0
      %v555 = vmax.f32 %v508, 0.0
      %v556 = vmax.f32 %v511, 0.0
      %v557 = vmax.f32 %v514, 0.0
      %v558 = vmax.f32 %v517, 0.0
      %v559 = vmax.f32 %v520, 0.0
      %v560 = vmax.f32 %v523, 0.0
      %v561 = vmax.f32 %v526, 0.0
      %v562 = vmax.f32 %v529, 0.0
      %v563 = vmax.f32 %v532, 0.0
      %v564 = vmax.f32 %v535, 0.0
      %v565 = vmax.f32 %v538, 0.0
      %v566 = vmax.f32 %v541, 0.0
      %v567 = vmax.f32 %v544, 0.0
      %v568 = vmax.f32 %v547, 0.0
      %v569 = vmax.f32 %v550, 0.0
      %v570 = vmax.f32 %v553, 0.0
      %v571 = vand.u32 2147483647, %v508
      %v572 = vand.u32 2147483647, %v511
      %v573 = vand.u32 2147483647, %v514
      %v574 = vand.u32 2147483647, %v517
      %v575 = vand.u32 2147483647, %v520
      %v576 = vand.u32 2147483647, %v523
      %v577 = vand.u32 2147483647, %v526
      %v578 = vand.u32 2147483647, %v529
      %v579 = vand.u32 2147483647, %v532
      %v580 = vand.u32 2147483647, %v535
      %v581 = vand.u32 2147483647, %v538
      %v582 = vand.u32 2147483647, %v541
      %v583 = vand.u32 2147483647, %v544
      %v584 = vand.u32 2147483647, %v547
      %v585 = vand.u32 2147483647, %v550
      %v586 = vand.u32 2147483647, %v553
      %v587 = vsub.f32 0.0, %v571
      %v588 = vsub.f32 0.0, %v572
      %v589 = vsub.f32 0.0, %v573
      %v590 = vsub.f32 0.0, %v574
      %v591 = vsub.f32 0.0, %v575
      %v592 = vsub.f32 0.0, %v576
      %v593 = vsub.f32 0.0, %v577
      %v594 = vsub.f32 0.0, %v578
      %v595 = vsub.f32 0.0, %v579
      %v596 = vsub.f32 0.0, %v580
      %v597 = vsub.f32 0.0, %v581
      %v598 = vsub.f32 0.0, %v582
      %v599 = vsub.f32 0.0, %v583
      %v600 = vsub.f32 0.0, %v584
      %v601 = vsub.f32 0.0, %v585
      %v602 = vsub.f32 0.0, %v586
      %v603 = vmul.f32 %v587, 1.442695
      %v604 = vpow.pop %v603
      %v605 = vmul.f32 %v588, 1.442695
      %v606 = vpow.pop %v605
      %v607 = vmul.f32 %v589, 1.442695
      %v608 = vpow.pop %v607
      %v609 = vmul.f32 %v590, 1.442695
      %v610 = vpow.pop %v609
      %v611 = vmul.f32 %v591, 1.442695
      %v612 = vpow.pop %v611
      %v613 = vmul.f32 %v592, 1.442695
      %v614 = vpow.pop %v613
      %v615 = vmul.f32 %v593, 1.442695
      %v616 = vpow.pop %v615
      %v617 = vmul.f32 %v594, 1.442695
      %v618 = vpow.pop %v617
      %v619 = vmul.f32 %v595, 1.442695
      %v620 = vpow.pop %v619
      %v621 = vmul.f32 %v596, 1.442695
      %v622 = vpow.pop %v621
      %v623 = vmul.f32 %v597, 1.442695
      %v624 = vpow.pop %v623
      %v625 = vmul.f32 %v598, 1.442695
      %v626 = vpow.pop %v625
      %v627 = vmul.f32 %v599, 1.442695
      %v628 = vpow.pop %v627
      %v629 = vmul.f32 %v600, 1.442695
      %v630 = vpow.pop %v629
      %v631 = vmul.f32 %v601, 1.442695
      %v632 = vpow.pop %v631
      %v633 = vmul.f32 %v602, 1.442695
      %v634 = vpow.pop %v633
      %v635 = vadd.f32 %v604, 1.0
      %v636 = vlog2.pop %v635
      %v637 = vmul.f32 %v636, 0.6931472
      %v638 = vmul.f32 -0.5, %v604
      %v639 = vadd.f32 %v638, 1.0
      %v640 = vmul.f32 %v639, %v604
      %v641 = vand.u32 2147483647, %v604
      %vm642 = vcmp.lt.f32.partialorder %v641, 0.0004427343
      %v643 = vsel %vm642, %v640, %v637
      %v644 = vadd.f32 %v606, 1.0
      %v645 = vlog2.pop %v644
      %v646 = vmul.f32 %v645, 0.6931472
      %v647 = vmul.f32 -0.5, %v606
      %v648 = vadd.f32 %v647, 1.0
      %v649 = vmul.f32 %v648, %v606
      %v650 = vand.u32 2147483647, %v606
      %vm651 = vcmp.lt.f32.partialorder %v650, 0.0004427343
      %v652 = vsel %vm651, %v649, %v646
      %v653 = vadd.f32 %v608, 1.0
      %v654 = vlog2.pop %v653
      %v655 = vmul.f32 %v654, 0.6931472
      %v656 = vmul.f32 -0.5, %v608
      %v657 = vadd.f32 %v656, 1.0
      %v658 = vmul.f32 %v657, %v608
      %v659 = vand.u32 2147483647, %v608
      %vm660 = vcmp.lt.f32.partialorder %v659, 0.0004427343
      %v661 = vsel %vm660, %v658, %v655
      %v662 = vadd.f32 %v610, 1.0
      %v663 = vlog2.pop %v662
      %v664 = vmul.f32 %v663, 0.6931472
      %v665 = vmul.f32 -0.5, %v610
      %v666 = vadd.f32 %v665, 1.0
      %v667 = vmul.f32 %v666, %v610
      %v668 = vand.u32 2147483647, %v610
      %vm669 = vcmp.lt.f32.partialorder %v668, 0.0004427343
      %v670 = vsel %vm669, %v667, %v664
      %v671 = vadd.f32 %v612, 1.0
      %v672 = vlog2.pop %v671
      %v673 = vmul.f32 %v672, 0.6931472
      %v674 = vmul.f32 -0.5, %v612
      %v675 = vadd.f32 %v674, 1.0
      %v676 = vmul.f32 %v675, %v612
      %v677 = vand.u32 2147483647, %v612
      %vm678 = vcmp.lt.f32.partialorder %v677, 0.0004427343
      %v679 = vsel %vm678, %v676, %v673
      %v680 = vadd.f32 %v614, 1.0
      %v681 = vlog2.pop %v680
      %v682 = vmul.f32 %v681, 0.6931472
      %v683 = vmul.f32 -0.5, %v614
      %v684 = vadd.f32 %v683, 1.0
      %v685 = vmul.f32 %v684, %v614
      %v686 = vand.u32 2147483647, %v614
      %vm687 = vcmp.lt.f32.partialorder %v686, 0.0004427343
      %v688 = vsel %vm687, %v685, %v682
      %v689 = vadd.f32 %v616, 1.0
      %v690 = vlog2.pop %v689
      %v691 = vmul.f32 %v690, 0.6931472
      %v692 = vmul.f32 -0.5, %v616
      %v693 = vadd.f32 %v692, 1.0
      %v694 = vmul.f32 %v693, %v616
      %v695 = vand.u32 2147483647, %v616
      %vm696 = vcmp.lt.f32.partialorder %v695, 0.0004427343
      %v697 = vsel %vm696, %v694, %v691
      %v698 = vadd.f32 %v618, 1.0
      %v699 = vlog2.pop %v698
      %v700 = vmul.f32 %v699, 0.6931472
      %v701 = vmul.f32 -0.5, %v618
      %v702 = vadd.f32 %v701, 1.0
      %v703 = vmul.f32 %v702, %v618
      %v704 = vand.u32 2147483647, %v618
      %vm705 = vcmp.lt.f32.partialorder %v704, 0.0004427343
      %v706 = vsel %vm705, %v703, %v700
      %v707 = vadd.f32 %v620, 1.0
      %v708 = vlog2.pop %v707
      %v709 = vmul.f32 %v708, 0.6931472
      %v710 = vmul.f32 -0.5, %v620
      %v711 = vadd.f32 %v710, 1.0
      %v712 = vmul.f32 %v711, %v620
      %v713 = vand.u32 2147483647, %v620
      %vm714 = vcmp.lt.f32.partialorder %v713, 0.0004427343
      %v715 = vsel %vm714, %v712, %v709
      %v716 = vadd.f32 %v622, 1.0
      %v717 = vlog2.pop %v716
      %v718 = vmul.f32 %v717, 0.6931472
      %v719 = vmul.f32 -0.5, %v622
      %v720 = vadd.f32 %v719, 1.0
      %v721 = vmul.f32 %v720, %v622
      %v722 = vand.u32 2147483647, %v622
      %vm723 = vcmp.lt.f32.partialorder %v722, 0.0004427343
      %v724 = vsel %vm723, %v721, %v718
      %v725 = vadd.f32 %v624, 1.0
      %v726 = vlog2.pop %v725
      %v727 = vmul.f32 %v726, 0.6931472
      %v728 = vmul.f32 -0.5, %v624
      %v729 = vadd.f32 %v728, 1.0
      %v730 = vmul.f32 %v729, %v624
      %v731 = vand.u32 2147483647, %v624
      %vm732 = vcmp.lt.f32.partialorder %v731, 0.0004427343
      %v733 = vsel %vm732, %v730, %v727
      %v734 = vadd.f32 %v626, 1.0
      %v735 = vlog2.pop %v734
      %v736 = vmul.f32 %v735, 0.6931472
      %v737 = vmul.f32 -0.5, %v626
      %v738 = vadd.f32 %v737, 1.0
      %v739 = vmul.f32 %v738, %v626
      %v740 = vand.u32 2147483647, %v626
      %vm741 = vcmp.lt.f32.partialorder %v740, 0.0004427343
      %v742 = vsel %vm741, %v739, %v736
      %v743 = vadd.f32 %v628, 1.0
      %v744 = vlog2.pop %v743
      %v745 = vmul.f32 %v744, 0.6931472
      %v746 = vmul.f32 -0.5, %v628
      %v747 = vadd.f32 %v746, 1.0
      %v748 = vmul.f32 %v747, %v628
      %v749 = vand.u32 2147483647, %v628
      %vm750 = vcmp.lt.f32.partialorder %v749, 0.0004427343
      %v751 = vsel %vm750, %v748, %v745
      %v752 = vadd.f32 %v630, 1.0
      %v753 = vlog2.pop %v752
      %v754 = vmul.f32 %v753, 0.6931472
      %v755 = vmul.f32 -0.5, %v630
      %v756 = vadd.f32 %v755, 1.0
      %v757 = vmul.f32 %v756, %v630
      %v758 = vand.u32 2147483647, %v630
      %vm759 = vcmp.lt.f32.partialorder %v758, 0.0004427343
      %v760 = vsel %vm759, %v757, %v754
      %v761 = vadd.f32 %v632, 1.0
      %v762 = vlog2.pop %v761
      %v763 = vmul.f32 %v762, 0.6931472
      %v764 = vmul.f32 -0.5, %v632
      %v765 = vadd.f32 %v764, 1.0
      %v766 = vmul.f32 %v765, %v632
      %v767 = vand.u32 2147483647, %v632
      %vm768 = vcmp.lt.f32.partialorder %v767, 0.0004427343
      %v769 = vsel %vm768, %v766, %v763
      %v770 = vadd.f32 %v634, 1.0
      %v771 = vlog2.pop %v770
      %v772 = vmul.f32 %v771, 0.6931472
      %v773 = vmul.f32 -0.5, %v634
      %v774 = vadd.f32 %v773, 1.0
      %v775 = vmul.f32 %v774, %v634
      %v776 = vand.u32 2147483647, %v634
      %vm777 = vcmp.lt.f32.partialorder %v776, 0.0004427343
      %v778 = vsel %vm777, %v775, %v772
      %v779 = vadd.f32 %v555, %v643
      %v780 = vadd.f32 %v556, %v652
      %v781 = vadd.f32 %v557, %v661
      %v782 = vadd.f32 %v558, %v670
      %v783 = vadd.f32 %v559, %v679
      %v784 = vadd.f32 %v560, %v688
      %v785 = vadd.f32 %v561, %v697
      %v786 = vadd.f32 %v562, %v706
      %v787 = vadd.f32 %v563, %v715
      %v788 = vadd.f32 %v564, %v724
      %v789 = vadd.f32 %v565, %v733
      %v790 = vadd.f32 %v566, %v742
      %v791 = vadd.f32 %v567, %v751
      %v792 = vadd.f32 %v568, %v760
      %v793 = vadd.f32 %v569, %v769
      %v794 = vadd.f32 %v570, %v778
      %v795 = vsub.f32 %v779, 0.6931472
      %v796 = vsub.f32 %v780, 0.6931472
      %v797 = vsub.f32 %v781, 0.6931472
      %v798 = vsub.f32 %v782, 0.6931472
      %v799 = vsub.f32 %v783, 0.6931472
      %v800 = vsub.f32 %v784, 0.6931472
      %v801 = vsub.f32 %v785, 0.6931472
      %v802 = vsub.f32 %v786, 0.6931472
      %v803 = vsub.f32 %v787, 0.6931472
      %v804 = vsub.f32 %v788, 0.6931472
      %v805 = vsub.f32 %v789, 0.6931472
      %v806 = vsub.f32 %v790, 0.6931472
      %v807 = vsub.f32 %v791, 0.6931472
      %v808 = vsub.f32 %v792, 0.6931472
      %v809 = vsub.f32 %v793, 0.6931472
      %v810 = vsub.f32 %v794, 0.6931472
      %v811 = vld [vmem:[%s5] sm:$0x1]
      %812 = vset.pattern.permute.xlu0 0
      %813 = vperm.xlu0 %812, %v417
      %v814 = vpop.permute.xlu0 %813
      %815 = vset.pattern.permute.xlu0 0
      %816 = vperm.xlu0 %815, %v418
      %v817 = vpop.permute.xlu0 %816
      %818 = vset.pattern.permute.xlu0 0
      %819 = vperm.xlu0 %818, %v419
      %v820 = vpop.permute.xlu0 %819
      %821 = vset.pattern.permute.xlu0 0
      %822 = vperm.xlu0 %821, %v420
      %v823 = vpop.permute.xlu0 %822
      %824 = vset.pattern.permute.xlu0 0
      %825 = vperm.xlu0 %824, %v421
      %v826 = vpop.permute.xlu0 %825
      %827 = vset.pattern.permute.xlu0 0
      %828 = vperm.xlu0 %827, %v422
      %v829 = vpop.permute.xlu0 %828
      %830 = vset.pattern.permute.xlu0 0
      %831 = vperm.xlu0 %830, %v423
      %v832 = vpop.permute.xlu0 %831
      %833 = vset.pattern.permute.xlu0 0
      %834 = vperm.xlu0 %833, %v424
      %v835 = vpop.permute.xlu0 %834
      %836 = vset.pattern.permute.xlu0 0
      %837 = vperm.xlu0 %836, %v425
      %v838 = vpop.permute.xlu0 %837
      %839 = vset.pattern.permute.xlu0 0
      %840 = vperm.xlu0 %839, %v426
      %v841 = vpop.permute.xlu0 %840
      %842 = vset.pattern.permute.xlu0 0
      %843 = vperm.xlu0 %842, %v427
      %v844 = vpop.permute.xlu0 %843
      %845 = vset.pattern.permute.xlu0 0
      %846 = vperm.xlu0 %845, %v428
      %v847 = vpop.permute.xlu0 %846
      %848 = vset.pattern.permute.xlu0 0
      %849 = vperm.xlu0 %848, %v429
      %v850 = vpop.permute.xlu0 %849
      %851 = vset.pattern.permute.xlu0 0
      %852 = vperm.xlu0 %851, %v430
      %v853 = vpop.permute.xlu0 %852
      %854 = vset.pattern.permute.xlu0 0
      %855 = vperm.xlu0 %854, %v431
      %v856 = vpop.permute.xlu0 %855
      %857 = vset.pattern.permute.xlu0 0
      %858 = vperm.xlu0 %857, %v432
      %v859 = vpop.permute.xlu0 %858
      %v860 = vperm.slane %v811, 0
      %vm861 = vcmp.eq.s32.totalorder %v814, %v860
      %vm862 = vcmp.eq.s32.totalorder %v817, %v860
      %vm863 = vcmp.eq.s32.totalorder %v820, %v860
      %vm864 = vcmp.eq.s32.totalorder %v823, %v860
      %vm865 = vcmp.eq.s32.totalorder %v826, %v860
      %vm866 = vcmp.eq.s32.totalorder %v829, %v860
      %vm867 = vcmp.eq.s32.totalorder %v832, %v860
      %vm868 = vcmp.eq.s32.totalorder %v835, %v860
      %vm869 = vcmp.eq.s32.totalorder %v838, %v860
      %vm870 = vcmp.eq.s32.totalorder %v841, %v860
      %vm871 = vcmp.eq.s32.totalorder %v844, %v860
      %vm872 = vcmp.eq.s32.totalorder %v847, %v860
      %vm873 = vcmp.eq.s32.totalorder %v850, %v860
      %vm874 = vcmp.eq.s32.totalorder %v853, %v860
      %vm875 = vcmp.eq.s32.totalorder %v856, %v860
      %vm876 = vcmp.eq.s32.totalorder %v859, %v860
      %v877 = vld [vmem:[%s6] sm:$0x1]
      %v879 = vperm.slane %v877, 0
      %v881 = vadd.f32 %v795, %v879
      %v882 = vadd.f32 %v796, %v879
      %v883 = vadd.f32 %v797, %v879
      %v884 = vadd.f32 %v798, %v879
      %v885 = vadd.f32 %v799, %v879
      %v886 = vadd.f32 %v800, %v879
      %v887 = vadd.f32 %v801, %v879
      %v888 = vadd.f32 %v802, %v879
      %v889 = vadd.f32 %v803, %v879
      %v890 = vadd.f32 %v804, %v879
      %v891 = vadd.f32 %v805, %v879
      %v892 = vadd.f32 %v806, %v879
      %v893 = vadd.f32 %v807, %v879
      %v894 = vadd.f32 %v808, %v879
      %v895 = vadd.f32 %v809, %v879
      %v896 = vadd.f32 %v810, %v879
      %v897 = vsel %vm861, %v881, 0.0
      %v898 = vsel %vm862, %v882, 0.0
      %v899 = vsel %vm863, %v883, 0.0
      %v900 = vsel %vm864, %v884, 0.0
      %v901 = vsel %vm865, %v885, 0.0
      %v902 = vsel %vm866, %v886, 0.0
      %v903 = vsel %vm867, %v887, 0.0
      %v904 = vsel %vm868, %v888, 0.0
      %v905 = vsel %vm869, %v889, 0.0
      %v906 = vsel %vm870, %v890, 0.0
      %v907 = vsel %vm871, %v891, 0.0
      %v908 = vsel %vm872, %v892, 0.0
      %v909 = vsel %vm873, %v893, 0.0
      %v910 = vsel %vm874, %v894, 0.0
      %v911 = vsel %vm875, %v895, 0.0
      %v912 = vsel %vm876, %v896, 0.0
      %v913 = vld [vmem:[%s389] sm:$0x1]
      %v914 = vlaneseq
      %v915 = vshrl.u32 %v914, 7
      %v916 = vperm.slane %v913, 0
      %vm917 = vcmp.eq.s32.totalorder %v915, %v916
      %v918 = vsel %vm917, 1, 0
      %v919 = vcvt.s32.f32 %v918
      %v920 = vld [vmem:[#allocation2] sm:$0xf]
      %921 = vmatpush.msra.mxu0 %v912
      %922 = vmatpush.msra.mxu0 %v911
      %923 = vmatpush.msra.mxu0 %v910
      %924 = vmatpush.msra.mxu0 %v909
      %925 = vmatpush.msra.mxu0 %v908
      %926 = vmatpush.msra.mxu0 %v907
      %927 = vmatpush.msra.mxu0 %v906
      %928 = vmatpush.msra.mxu0 %v905
      %929 = vmatpush.msra.mxu0 %v904
      %930 = vmatpush.msra.mxu0 %v903
      %931 = vmatpush.msra.mxu0 %v902
      %932 = vmatpush.msra.mxu0 %v901
      %933 = vmatpush.msra.mxu0 %v900
      %934 = vmatpush.msra.mxu0 %v899
      %935 = vmatpush.msra.mxu0 %v898
      %936 = vmatpush.msra.mxu0 %v897
      %937 = vmatmul.f32.gmra.mxu0 %v919
      %v938 = vpop.f32.mrf.mxu0
      %v939 = vadd.f32 0.0, %v938
      %940 = vdwg.mxu0
      %v941 = vadd.f32 %v920, %v939
      %942 = vst [vmem:[#allocation2] sm:$0xf] %v941
      %p943 = scmp.eq.s32.totalorder %s24, 3
      // Predicated region
      $region57: #{tpu_custom_call.1} parent=51 // pred_check
        %p944 = pneg %p943
      $region58: #{tpu_custom_call.1} parent=51 // pred_check_branch
        %946 = sbr.rel (%p944) target = $region60
      $region59: #{tpu_custom_call.1} parent=51 // pred_region
        %v947 = vld [vmem:[#allocation2] sm:$0xf]
        %v948 = vld [vmem:[%s7] sm:$0xff]
        %v949 = vld [vmem:[%s7 + $0x8] sm:$0xff]
        %v950 = vld [vmem:[%s7 + $0x10] sm:$0xff]
        %v951 = vld [vmem:[%s7 + $0x18] sm:$0xff]
        %v952 = vld [vmem:[%s7 + $0x20] sm:$0xff]
        %v953 = vld [vmem:[%s7 + $0x28] sm:$0xff]
        %v954 = vld [vmem:[%s7 + $0x30] sm:$0xff]
        %v955 = vld [vmem:[%s7 + $0x38] sm:$0xff]
        %v956 = vld [vmem:[%s7 + $0x40] sm:$0xff]
        %v957 = vld [vmem:[%s7 + $0x48] sm:$0xff]
        %v958 = vld [vmem:[%s7 + $0x50] sm:$0xff]
        %v959 = vld [vmem:[%s7 + $0x58] sm:$0xff]
        %v960 = vld [vmem:[%s7 + $0x60] sm:$0xff]
        %v961 = vld [vmem:[%s7 + $0x68] sm:$0xff]
        %v962 = vld [vmem:[%s7 + $0x70] sm:$0xff]
        %v963 = vld [vmem:[%s7 + $0x78] sm:$0xff]
        %964 = vmatpush.msra.mxu0 %v963
        %965 = vmatpush.msra.mxu0 %v962
        %966 = vmatpush.msra.mxu0 %v961
        %967 = vmatpush.msra.mxu0 %v960
        %968 = vmatpush.msra.mxu0 %v959
        %969 = vmatpush.msra.mxu0 %v958
        %970 = vmatpush.msra.mxu0 %v957
        %971 = vmatpush.msra.mxu0 %v956
        %972 = vmatpush.msra.mxu0 %v955
        %973 = vmatpush.msra.mxu0 %v954
        %974 = vmatpush.msra.mxu0 %v953
        %975 = vmatpush.msra.mxu0 %v952
        %976 = vmatpush.msra.mxu0 %v951
        %977 = vmatpush.msra.mxu0 %v950
        %978 = vmatpush.msra.mxu0 %v949
        %979 = vmatpush.msra.mxu0 %v948
        %980 = vmatmul.f32.gmra.mxu0 %v947
        %v981 = vpop.f32.mrf.mxu0
        %v982 = vadd.f32 0.0, %v981
        %983 = vdwg.mxu0
        %vm984 = vcmask 3072
        %985 = vst.msk [vmem:[%s395] sm:$0xf] %vm984, %v982
      $region60: #{tpu_custom_call.1} parent=51 // pred_fallthru
        _
      %p986 = scmp.lt.s32.totalorder %s23, 0
      %s987 = scalar_select %p986, %s23, 0
      %s988 = smul.addr %s987, 4
      %s989 = scalar_lea.vmem %s8, %s988
      // Predicated region
      $region61: #{tpu_custom_call.1} parent=51 // pred_check
        %p990 = pneg %p244
      $region62: #{tpu_custom_call.1} parent=51 // pred_check_branch
        %992 = sbr.rel (%p990) target = $region64
      $region63: #{tpu_custom_call.1} parent=51 // pred_region
        _
      $region64: #{tpu_custom_call.1} parent=51 // pred_fallthru
        _
      // Predicated region
      $region65: #{tpu_custom_call.1} parent=51 // pred_check
        %p993 = pneg %p244
      $region66: #{tpu_custom_call.1} parent=51 // pred_check_branch
        %995 = sbr.rel (%p993) target = $region68
      $region67: #{tpu_custom_call.1} parent=51 // pred_region
        %p996 = scmp.lt.s32.totalorder %s23, 0
        %s997 = scalar_select %p996, %s23, 0
        %s998 = smul.addr %s997, 4
        %s999 = scalar_lea.vmem %s8, %s998
      $region68: #{tpu_custom_call.1} parent=51 // pred_fallthru
        _
    $region52: #{tpu_custom_call.1} parent=5 // pred_fallthru
      _
    %p1000 = scmp.le.s32.totalorder 2, %s14
    // Predicated region
    $region69: #{tpu_custom_call.1} parent=5 // pred_check
      %p1001 = pneg %p1000
    $region70: #{tpu_custom_call.1} parent=5 // pred_check_branch
      %1003 = sbr.rel (%p1001) target = $region72
    $region71: #{tpu_custom_call.1} parent=5 // pred_region
      %s1004 = ssub.s32 %s14, 2
    $region72: #{tpu_custom_call.1} parent=5 // pred_fallthru
      _
  $region6: #{tpu_custom_call.1} parent=0 // loop_footer
    %s18 = sadd.s32 1, %s14
  $region7: #{tpu_custom_call.1} parent=0 // loop_footer_branch
    %13 = sbr.rel target = $region3
  $region8: #{tpu_custom_call.1} parent=0 // loop_exit
    _

</llo_original>
